<compile_context>
chip_gen: v6e
topology: v6e:2x2x1
jax: 0.10.0
libtpu: 0.0.40
codegen_flags: <defaults>
</compile_context>

<pallas_src>
import functools

import numpy as np
import jax
import jax.numpy as jnp
from jax.experimental import pallas as pl
from jax.experimental.pallas import tpu as pltpu


# ---------------------------------------------------------------------------
# Pallas kernel: per-spin bit select + running product over spins
# ---------------------------------------------------------------------------
def _unentangled_kernel(a0_ref, a1_ref, packed_ref, out_ref, *, nspin):
    """out[b] = prod_j ( a0[j] if bit_j(packed[b]) == 0 else a1[j] ).

    packed_ref : (TS, 128) int32, bit j of each element == (1 - s_j) / 2
    a0_ref / a1_ref : (nspin,) f32 in SMEM (post-processed amplitude table)
    """
    packed = packed_ref[...]                              # dense int32 tile
    # Running product: only one live full-tile f32 intermediate at a time
    # (no log-depth tree -> no vreg spills / VMEM scratch pressure).
    a0 = a0_ref[0]
    a1 = a1_ref[0]
    acc = jnp.where((packed & 1) != 0, a1, a0)
    for j in range(1, nspin):                             # nspin is tiny & static
        a0 = a0_ref[j]                                    # bind scalars once per spin
        a1 = a1_ref[j]
        acc = acc * jnp.where((packed & (1 << j)) != 0, a1, a0)
    out_ref[...] = acc                                    # lane-dense (TS, 128) store


# ---------------------------------------------------------------------------
# Host-side parameter prep: fold _postprocess + spin reorder into the table
# ---------------------------------------------------------------------------
def prepare_amp_table(amp_table, recover_idx, cellsize):
    """Fold the per-cell L2 normalization / empty-cell patch of `_postprocess`
    into the per-spin amplitude table, and apply the inverse spin reorder so
    the kernel consumes spins in natural order (the product over all spins is
    permutation invariant).  Returns (a0, a1): selected amp for spin j is
    a0[j] when s_j = +1 (bit 0) and a1[j] when s_j = -1 (bit 1)."""
    A = np.asarray(amp_table, np.float32)                 # (nspin, 2), reordered order
    nspin = A.shape[0]
    assert nspin % cellsize == 0
    ncell = nspin // cellsize
    K = 2 ** cellsize

    q = A[:, 0] ** 2 + A[:, 1] ** 2                       # per-spin sum of squares
    denom2 = q.reshape(ncell, cellsize).prod(-1)          # == sum_k amp_cell[c,k]^2
    scaled = A.copy()
    for c in range(ncell):
        rows = slice(c * cellsize, (c + 1) * cellsize)
        if denom2[c] <= 0.0:
            # empty cell: _postprocess adds +1 to every component then divides
            # by sqrt(K) -> every selected component becomes K**-0.5
            scaled[rows, :] = np.float32(K ** (-0.5 / cellsize))
        else:
            scaled[rows, :] *= np.float32(float(denom2[c]) ** (-0.5 / cellsize))

    scaled_nat = scaled[np.asarray(recover_idx)]          # back to natural spin order
    return (jnp.asarray(scaled_nat[:, 0], jnp.float32),
            jnp.asarray(scaled_nat[:, 1], jnp.float32))


# ---------------------------------------------------------------------------
# Generation-aware tiling
# ---------------------------------------------------------------------------
def _vmem_capacity_bytes():
    try:
        cap = getattr(pltpu.get_tpu_info(), "vmem_capacity_bytes", None)
        if cap:
            return int(cap)
    except Exception:
        pass
    return 64 << 20                                       # conservative (v7x-sized)


def _choose_tiling(nb, vmem_cap):
    """Rows-of-128-lanes per grid block for the packed-int32 / f32 streams."""
    row_bytes = 128 * 4
    if vmem_cap >= (100 << 20):
        # v5e / v6e: single TensorCore, 128 MiB VMEM -> few large blocks
        target_rows = (4 << 20) // row_bytes              # ~4 MiB input block
        min_steps = 1
    else:
        # v7x: 2 TensorCores, 64 MiB VMEM -> >= 4 grid steps (>= 2 per core)
        # and smaller blocks so double buffering keeps headroom.
        target_rows = (2 << 20) // row_bytes              # ~2 MiB input block
        min_steps = 4
    ts = min(target_rows, pl.cdiv(nb, min_steps))
    ts = max(8, (ts // 8) * 8)                            # align to (8, 128) tile
    return ts


# ---------------------------------------------------------------------------
# Forward wrapper
# ---------------------------------------------------------------------------
@jax.jit
def unentangled_forward(basis_input, a0, a1):
    basis_input = jnp.asarray(basis_input)
    B, nspin = basis_input.shape
    assert nspin <= 31  # TODO(synk): multiple packed words needed for nspin > 31

    # Single cheap relayout pass: bit-pack each sample's spins into one int32.
    # The (B, nspin) int32 input is read exactly once (irreducible); the write
    # is only 4 B/sample.
    s = basis_input.astype(jnp.int32)
    bits = (1 - s) // 2                                   # +1 -> 0, -1 -> 1
    weights = jnp.left_shift(jnp.int32(1), jnp.arange(nspin, dtype=jnp.int32))
    packed = jnp.sum(bits * weights, axis=-1, dtype=jnp.int32)     # (B,)

    nb = pl.cdiv(B, 128)
    vmem_cap = _vmem_capacity_bytes()
    ts = _choose_tiling(nb, vmem_cap)
    nb_pad = pl.cdiv(nb, ts) * ts
    b_pad = nb_pad * 128
    if b_pad != B:
        # pad the tiny packed vector only (4 B/sample); padded bits = 0 -> finite
        # values that are sliced off below.
        packed = jnp.pad(packed, (0, b_pad - B))
    packed2 = packed.reshape(nb_pad, 128)

    block_bytes = ts * 128 * 4
    vmem_limit = int(min(vmem_cap // 2, max(32 << 20, 10 * block_bytes)))

    kern = functools.partial(_unentangled_kernel, nspin=nspin)
    out = pl.pallas_call(
        kern,
        out_shape=jax.ShapeDtypeStruct((nb_pad, 128), jnp.float32),
        grid=(nb_pad // ts,),
        in_specs=[
            pl.BlockSpec(memory_space=pltpu.MemorySpace.SMEM),    # a0 (nspin,)
            pl.BlockSpec(memory_space=pltpu.MemorySpace.SMEM),    # a1 (nspin,)
            pl.BlockSpec((ts, 128), lambda i: (i, 0)),            # packed spins
        ],
        out_specs=pl.BlockSpec((ts, 128), lambda i: (i, 0)),
        compiler_params=pltpu.CompilerParams(
            dimension_semantics=("parallel",),
            vmem_limit_bytes=vmem_limit),
    )(a0, a1, packed2)

    psi_r = out.reshape(1, b_pad)[:, :B]
    psi_i = jnp.zeros_like(psi_r)                         # forward returns psi_i == 0
    return psi_r, psi_i


# ---------------------------------------------------------------------------
# Deterministic parameter construction (mirrors __init__ / reinit, stype='neel')
# ---------------------------------------------------------------------------
def make_reorder_idx(nspin, pbc=True):
    if not pbc:
        return list(range(nspin))
    idx = []
    for i in range(nspin // 2):
        idx += [i, nspin - i - 1]
    if nspin % 2 == 1:
        idx.append(nspin // 2)
    return idx


def make_unentangled_amp_neel(nspin, epsilon, reorder_idx):
    amp = np.zeros((nspin, 2), np.float32)
    amp[0::2, 0] += epsilon
    amp[1::2, 0] += (1.0 - epsilon ** 2) ** 0.5
    amp[:, 1] = (1.0 - amp[:, 0] ** 2) ** 0.5
    amp = amp[np.asarray(reorder_idx), :]     # == reorder(amp.T).T in the module
    return amp


# ---------------------------------------------------------------------------
# Literal (PyTorch-faithful) numpy reference for validation
# ---------------------------------------------------------------------------
def reference_forward(basis_input, amp_table, reorder_idx, cellsize):
    basis = np.asarray(basis_input)
    B, nspin = basis.shape
    ncell = nspin // cellsize
    K = 2 ** cellsize
    A = np.asarray(amp_table, np.float32)

    s = basis.astype(np.int64)[:, reorder_idx]                 # reassign + reorder

    # amp_net_unentangled: amp[0,b,k,c] = prod_j A[c*cellsize+j, bit_j(k)]
    Ar = A.reshape(ncell, cellsize, 2)
    amp_cell = np.ones((ncell, K), np.float32)
    for k in range(K):
        for j in range(cellsize):
            bit = (k >> (cellsize - 1 - j)) & 1
            amp_cell[:, k] = amp_cell[:, k] * Ar[:, j, bit]

    # _postprocess (sz_sum=None -> alive_mask all ones), after transpose(-1,-2)
    amplitude = np.broadcast_to(amp_cell[None, None], (1, B, ncell, K)).astype(np.float32).copy()
    amp2 = (amplitude ** 2).sum(-1)
    needs = (amp2 <= 0).astype(np.float32)
    amplitude = amplitude + needs[..., None]
    amplitude = amplitude / np.sqrt((amplitude ** 2).sum(-1, keepdims=True))

    # _select + prod(-1)
    sbit = ((1 - s) // 2).reshape(B, ncell, cellsize)
    pw = 2 ** (cellsize - 1 - np.arange(cellsize))
    idx = (sbit * pw).sum(-1)                                   # (B, ncell)
    selected = np.take_along_axis(amplitude[0], idx[..., None], axis=-1)[..., 0]
    psi_r = selected.prod(-1)[None, :].astype(np.float32)
    psi_i = np.zeros_like(psi_r)
    return psi_r, psi_i


if __name__ == "__main__":
    nspin, cellsize = 8, 2                     # ncell=4, groups=1, pbc=True
    reorder_idx = make_reorder_idx(nspin, pbc=True)
    recover_idx = [0] * nspin
    for i, p in enumerate(reorder_idx):
        recover_idx[p] = i

    key = jax.random.PRNGKey(0)
    neel = jnp.asarray([-1, 1] * (nspin // 2), jnp.int32)       # reference_state buffer

    # batches: multi-step grid (4096), single-block (512), ragged/padded (200)
    for B in (4096, 512, 200):
        key, sub = jax.random.split(key)
        spins = jnp.where(jax.random.bernoulli(sub, 0.5, (B, nspin)), 1, -1).astype(jnp.int32)
        spins = spins.at[0].set(neel)                           # include the Néel config

        # epsilon=0.0 matches __init__; epsilon=0.3 exercises reinit(epsilon) numerics
        for eps in (0.0, 0.3):
            A = make_unentangled_amp_neel(nspin, eps, reorder_idx)
            a0, a1 = prepare_amp_table(A, recover_idx, cellsize)

            psi_r, psi_i = unentangled_forward(spins, a0, a1)
            psi_r, psi_i = jax.block_until_ready((psi_r, psi_i))

            ref_r, ref_i = reference_forward(np.asarray(spins), A, reorder_idx, cellsize)
            assert psi_r.shape == (1, B) and psi_i.shape == (1, B)
            np.testing.assert_allclose(np.asarray(psi_r), ref_r, rtol=1e-5, atol=1e-6)
            np.testing.assert_allclose(np.asarray(psi_i), ref_i, rtol=1e-5, atol=1e-6)

    print("KERNEL_OK")
</pallas_src>

<mosaic_0001>
module attributes {stable_mosaic.version = 11 : i64} {
  func.func @_unentangled_kernel(%arg0: i32, %arg1: memref<8xf32, #tpu.memory_space<smem>>, %arg2: memref<8xf32, #tpu.memory_space<smem>>, %arg3: memref<8x128xi32, #tpu.memory_space<vmem>>, %arg4: memref<8x128xf32, #tpu.memory_space<vmem>>) attributes {dimension_semantics = [#tpu.dimension_semantics<parallel>], iteration_bounds = array<i64: 4>, scalar_prefetch = 0 : i64, scratch_operands = 0 : i64, tpu.core_type = #tpu.core_type<tc>, window_params = [{transform_indices = @transform_0, window_bounds = array<i64: 8>}, {transform_indices = @transform_1, window_bounds = array<i64: 8>}, {transform_indices = @transform_2, window_bounds = array<i64: 8, 128>}, {transform_indices = @transform_3, window_bounds = array<i64: 8, 128>}]} {
    %c0 = arith.constant 0 : index
    %c0_0 = arith.constant 0 : index
    %0 = vector.load %arg3[%c0, %c0_0] : memref<8x128xi32, #tpu.memory_space<vmem>>, vector<8x128xi32>
    %c0_1 = arith.constant 0 : index
    %1 = memref.load %arg1[%c0_1] : memref<8xf32, #tpu.memory_space<smem>>
    %c0_2 = arith.constant 0 : index
    %2 = memref.load %arg2[%c0_2] : memref<8xf32, #tpu.memory_space<smem>>
    %c1_i32 = arith.constant 1 : i32
    %3 = vector.broadcast %c1_i32 : i32 to vector<8x128xi32>
    %4 = arith.andi %0, %3 : vector<8x128xi32>
    %c0_i32 = arith.constant 0 : i32
    %5 = vector.broadcast %c0_i32 : i32 to vector<8x128xi32>
    %6 = arith.cmpi ne, %4, %5 : vector<8x128xi32>
    %7 = vector.broadcast %2 : f32 to vector<8x128xf32>
    %8 = vector.broadcast %1 : f32 to vector<8x128xf32>
    %9 = arith.select %6, %7, %8 : vector<8x128xi1>, vector<8x128xf32>
    %c1 = arith.constant 1 : index
    %10 = memref.load %arg1[%c1] : memref<8xf32, #tpu.memory_space<smem>>
    %c1_3 = arith.constant 1 : index
    %11 = memref.load %arg2[%c1_3] : memref<8xf32, #tpu.memory_space<smem>>
    %c2_i32 = arith.constant 2 : i32
    %12 = vector.broadcast %c2_i32 : i32 to vector<8x128xi32>
    %13 = arith.andi %0, %12 : vector<8x128xi32>
    %c0_i32_4 = arith.constant 0 : i32
    %14 = vector.broadcast %c0_i32_4 : i32 to vector<8x128xi32>
    %15 = arith.cmpi ne, %13, %14 : vector<8x128xi32>
    %16 = vector.broadcast %11 : f32 to vector<8x128xf32>
    %17 = vector.broadcast %10 : f32 to vector<8x128xf32>
    %18 = arith.select %15, %16, %17 : vector<8x128xi1>, vector<8x128xf32>
    %19 = arith.mulf %9, %18 : vector<8x128xf32>
    %c2 = arith.constant 2 : index
    %20 = memref.load %arg1[%c2] : memref<8xf32, #tpu.memory_space<smem>>
    %c2_5 = arith.constant 2 : index
    %21 = memref.load %arg2[%c2_5] : memref<8xf32, #tpu.memory_space<smem>>
    %c4_i32 = arith.constant 4 : i32
    %22 = vector.broadcast %c4_i32 : i32 to vector<8x128xi32>
    %23 = arith.andi %0, %22 : vector<8x128xi32>
    %c0_i32_6 = arith.constant 0 : i32
    %24 = vector.broadcast %c0_i32_6 : i32 to vector<8x128xi32>
    %25 = arith.cmpi ne, %23, %24 : vector<8x128xi32>
    %26 = vector.broadcast %21 : f32 to vector<8x128xf32>
    %27 = vector.broadcast %20 : f32 to vector<8x128xf32>
    %28 = arith.select %25, %26, %27 : vector<8x128xi1>, vector<8x128xf32>
    %29 = arith.mulf %19, %28 : vector<8x128xf32>
    %c3 = arith.constant 3 : index
    %30 = memref.load %arg1[%c3] : memref<8xf32, #tpu.memory_space<smem>>
    %c3_7 = arith.constant 3 : index
    %31 = memref.load %arg2[%c3_7] : memref<8xf32, #tpu.memory_space<smem>>
    %c8_i32 = arith.constant 8 : i32
    %32 = vector.broadcast %c8_i32 : i32 to vector<8x128xi32>
    %33 = arith.andi %0, %32 : vector<8x128xi32>
    %c0_i32_8 = arith.constant 0 : i32
    %34 = vector.broadcast %c0_i32_8 : i32 to vector<8x128xi32>
    %35 = arith.cmpi ne, %33, %34 : vector<8x128xi32>
    %36 = vector.broadcast %31 : f32 to vector<8x128xf32>
    %37 = vector.broadcast %30 : f32 to vector<8x128xf32>
    %38 = arith.select %35, %36, %37 : vector<8x128xi1>, vector<8x128xf32>
    %39 = arith.mulf %29, %38 : vector<8x128xf32>
    %c4 = arith.constant 4 : index
    %40 = memref.load %arg1[%c4] : memref<8xf32, #tpu.memory_space<smem>>
    %c4_9 = arith.constant 4 : index
    %41 = memref.load %arg2[%c4_9] : memref<8xf32, #tpu.memory_space<smem>>
    %c16_i32 = arith.constant 16 : i32
    %42 = vector.broadcast %c16_i32 : i32 to vector<8x128xi32>
    %43 = arith.andi %0, %42 : vector<8x128xi32>
    %c0_i32_10 = arith.constant 0 : i32
    %44 = vector.broadcast %c0_i32_10 : i32 to vector<8x128xi32>
    %45 = arith.cmpi ne, %43, %44 : vector<8x128xi32>
    %46 = vector.broadcast %41 : f32 to vector<8x128xf32>
    %47 = vector.broadcast %40 : f32 to vector<8x128xf32>
    %48 = arith.select %45, %46, %47 : vector<8x128xi1>, vector<8x128xf32>
    %49 = arith.mulf %39, %48 : vector<8x128xf32>
    %c5 = arith.constant 5 : index
    %50 = memref.load %arg1[%c5] : memref<8xf32, #tpu.memory_space<smem>>
    %c5_11 = arith.constant 5 : index
    %51 = memref.load %arg2[%c5_11] : memref<8xf32, #tpu.memory_space<smem>>
    %c32_i32 = arith.constant 32 : i32
    %52 = vector.broadcast %c32_i32 : i32 to vector<8x128xi32>
    %53 = arith.andi %0, %52 : vector<8x128xi32>
    %c0_i32_12 = arith.constant 0 : i32
    %54 = vector.broadcast %c0_i32_12 : i32 to vector<8x128xi32>
    %55 = arith.cmpi ne, %53, %54 : vector<8x128xi32>
    %56 = vector.broadcast %51 : f32 to vector<8x128xf32>
    %57 = vector.broadcast %50 : f32 to vector<8x128xf32>
    %58 = arith.select %55, %56, %57 : vector<8x128xi1>, vector<8x128xf32>
    %59 = arith.mulf %49, %58 : vector<8x128xf32>
    %c6 = arith.constant 6 : index
    %60 = memref.load %arg1[%c6] : memref<8xf32, #tpu.memory_space<smem>>
    %c6_13 = arith.constant 6 : index
    %61 = memref.load %arg2[%c6_13] : memref<8xf32, #tpu.memory_space<smem>>
    %c64_i32 = arith.constant 64 : i32
    %62 = vector.broadcast %c64_i32 : i32 to vector<8x128xi32>
    %63 = arith.andi %0, %62 : vector<8x128xi32>
    %c0_i32_14 = arith.constant 0 : i32
    %64 = vector.broadcast %c0_i32_14 : i32 to vector<8x128xi32>
    %65 = arith.cmpi ne, %63, %64 : vector<8x128xi32>
    %66 = vector.broadcast %61 : f32 to vector<8x128xf32>
    %67 = vector.broadcast %60 : f32 to vector<8x128xf32>
    %68 = arith.select %65, %66, %67 : vector<8x128xi1>, vector<8x128xf32>
    %69 = arith.mulf %59, %68 : vector<8x128xf32>
    %c7 = arith.constant 7 : index
    %70 = memref.load %arg1[%c7] : memref<8xf32, #tpu.memory_space<smem>>
    %c7_15 = arith.constant 7 : index
    %71 = memref.load %arg2[%c7_15] : memref<8xf32, #tpu.memory_space<smem>>
    %c128_i32 = arith.constant 128 : i32
    %72 = vector.broadcast %c128_i32 : i32 to vector<8x128xi32>
    %73 = arith.andi %0, %72 : vector<8x128xi32>
    %c0_i32_16 = arith.constant 0 : i32
    %74 = vector.broadcast %c0_i32_16 : i32 to vector<8x128xi32>
    %75 = arith.cmpi ne, %73, %74 : vector<8x128xi32>
    %76 = vector.broadcast %71 : f32 to vector<8x128xf32>
    %77 = vector.broadcast %70 : f32 to vector<8x128xf32>
    %78 = arith.select %75, %76, %77 : vector<8x128xi1>, vector<8x128xf32>
    %79 = arith.mulf %69, %78 : vector<8x128xf32>
    %c0_17 = arith.constant 0 : index
    %c0_18 = arith.constant 0 : index
    %80 = vector.load %arg4[%c0_17, %c0_18] : memref<8x128xf32, #tpu.memory_space<vmem>>, vector<8x128xf32>
    tpu.vector_store %arg4[%c0_17, %c0_18], %79 {strides = array<i32>} : memref<8x128xf32, #tpu.memory_space<vmem>>, vector<8x128xf32>,
    return
  }
  func.func @transform_0(%arg0: i32) -> i32 {
    %c0_i32 = arith.constant 0 : i32
    %c0_i32_0 = arith.constant 0 : i32
    return %c0_i32 : i32
  }
  func.func @transform_1(%arg0: i32) -> i32 {
    %c0_i32 = arith.constant 0 : i32
    %c0_i32_0 = arith.constant 0 : i32
    return %c0_i32 : i32
  }
  func.func @transform_2(%arg0: i32) -> (i32, i32) {
    %c0_i32 = arith.constant 0 : i32
    %c0_i32_0 = arith.constant 0 : i32
    return %arg0, %c0_i32 : i32, i32
  }
  func.func @transform_3(%arg0: i32) -> (i32, i32) {
    %c0_i32 = arith.constant 0 : i32
    %c0_i32_0 = arith.constant 0 : i32
    return %arg0, %c0_i32 : i32, i32
  }
}

</mosaic_0001>

<llo_original>
// kernel: unentangled_forward.1
$region0: #{unentangled_forward.1}
  #allocation0 [shape = 'u32[]', space=smem, size = 0x4, offset = 0x4, fixed_abs, tag = 'smem constant byte address 0x4 - core index']
  #allocation1 [shape = 'u32[144,128]{1,0:T(1,128)}', space=vmem, size = 0x12000, scoped, tag = 'internal scratch']
  %s0 = inlined_call_operand.vmem [shape: f32[8], index: 0, kind: input, shape index: {}]
  %s1 = inlined_call_operand.vmem [shape: f32[8], index: 1, kind: input, shape index: {}]
  %s2 = inlined_call_operand.vmem [shape: s32[32,128], index: 2, kind: input, shape index: {}]
  %s3 = inlined_call_operand.hbm [shape: f32[32,128], index: 3, kind: output, shape index: {}]
  %s4 = sld [smem:[#allocation0]]
  $region53: #{unentangled_forward.1} parent=0
    _
  %s6 = ssub.s32 1, %s4
  %s7 = scalar_select 0, %s6, %s4
  $region1: #{unentangled_forward.1} parent=0
    #allocation2 [shape = 'u8[512]{0}', space=smem, size = 0x200, scoped, tag = 'input window, operand 0, single buffered']
    #allocation3 [shape = 's32[2]{0}', space=sflag, size = 0x8, scoped, tag = 'scoped memory for unentangled_forward.1']
    #allocation4 [shape = 's32[2]{0}', space=sflag, size = 0x8, scoped, tag = 'scoped memory for unentangled_forward.1']
    #allocation5 [shape = 'u8[512]{0}', space=smem, size = 0x200, scoped, tag = 'input window, operand 1, single buffered']
    #allocation6 [shape = 's32[1]{0}', space=sflag, size = 0x4, scoped, tag = 'scoped memory for unentangled_forward.1']
    #allocation7 [shape = 'u8[8192]{0}', space=vmem, size = 0x2000, scoped, tag = 'output window, operand 0']
    %8 = vsyncpa [#allocation4], 0
    %9 = vsyncpa [#allocation6], 0
    %10 = vsyncpa [#allocation3], 0
    %s11 = scalar_lea.sflag [#allocation3], 1
    %12 = vsyncpa %s11, 0
    loop: start=0, step=1, limit=6
    $region2: #{unentangled_forward.1} parent=1 // loop_pre_header
      _
    $region3: #{unentangled_forward.1} parent=1 // loop_header
      %s14 = sphi 0, %s18
      %p15 = scmp.ge.s32.totalorder %s14, 6
      %s22 = sphi 0, %s22
      %s24 = sphi 0, %s22
      %s25 = sphi 0, %s24
      %s39 = sphi 0, %s25
      %s43 = sphi 0, %s43
      %s45 = sphi 0, %s43
      %s46 = sphi 0, %s45
      %s60 = sphi 0, %s46
      %s66 = sphi 0, %s68
      %s69 = sphi 0, %s66
      %s70 = sphi 0, %s69
      %s86 = sphi 0, %s70
      %s92 = sphi 0, %s94
      %s95 = sphi 0, %s92
      %s96 = sphi 0, %s95
      %s112 = sphi 0, %s96
    $region4: #{unentangled_forward.1} parent=1 // loop_header_branch
      %17 = sbr.rel (%p15) target = $region8
    $region5: #{unentangled_forward.1} parent=1 // loop_body
      %s19 = ssub.s32 %s14, 1
      %s20 = ssub.s32 %s14, 2
      %s21 = sadd.s32 %s14, 1
      %s23 = sadd.s32 %s22, 1
      %p26 = scmp.eq.s32.totalorder %s14, 3
      %p27 = scmp.ne.s32.totalorder %s22, %s24
      %p28 = scmp.eq.s32.totalorder %s14, 0
      %p29 = por %p27, %p28
      %p30 = scmp.ne.s32.totalorder %s22, %s24
      %p31 = scmp.eq.s32.totalorder %s19, 3
      %p32 = por %p30, %p31
      %p33 = scmp.ne.s32.totalorder %s24, %s25
      %p34 = scmp.eq.s32.totalorder %s19, 0
      %p35 = por %p33, %p34
      %p36 = scmp.ne.s32.totalorder %s24, %s25
      %p37 = scmp.eq.s32.totalorder %s20, 3
      %p38 = por %p36, %p37
      %p40 = scmp.ne.s32.totalorder %s25, %s39
      %p41 = scmp.eq.s32.totalorder %s20, 0
      %p42 = por %p40, %p41
      %s44 = sadd.s32 %s43, 1
      %p47 = scmp.eq.s32.totalorder %s14, 3
      %p48 = scmp.ne.s32.totalorder %s43, %s45
      %p49 = scmp.eq.s32.totalorder %s14, 0
      %p50 = por %p48, %p49
      %p51 = scmp.ne.s32.totalorder %s43, %s45
      %p52 = scmp.eq.s32.totalorder %s19, 3
      %p53 = por %p51, %p52
      %p54 = scmp.ne.s32.totalorder %s45, %s46
      %p55 = scmp.eq.s32.totalorder %s19, 0
      %p56 = por %p54, %p55
      %p57 = scmp.ne.s32.totalorder %s45, %s46
      %p58 = scmp.eq.s32.totalorder %s20, 3
      %p59 = por %p57, %p58
      %p61 = scmp.ne.s32.totalorder %s46, %s60
      %p62 = scmp.eq.s32.totalorder %s20, 0
      %p63 = por %p61, %p62
      %s64 = ssub.s32 %s14, %s21
      %p65 = scmp.eq.s32.totalorder %s64, 0
      %s67 = sadd.s32 %s66, 1
      %s68 = scalar_select %p65, %s66, %s67
      %p71 = pneg %p65
      %p72 = scmp.eq.s32.totalorder %s14, 3
      %p73 = por %p71, %p72
      %p74 = scmp.ne.s32.totalorder %s66, %s69
      %p75 = scmp.eq.s32.totalorder %s14, 0
      %p76 = por %p74, %p75
      %p77 = scmp.ne.s32.totalorder %s66, %s69
      %p78 = scmp.eq.s32.totalorder %s19, 3
      %p79 = por %p77, %p78
      %p80 = scmp.ne.s32.totalorder %s69, %s70
      %p81 = scmp.eq.s32.totalorder %s19, 0
      %p82 = por %p80, %p81
      %p83 = scmp.ne.s32.totalorder %s69, %s70
      %p84 = scmp.eq.s32.totalorder %s20, 3
      %p85 = por %p83, %p84
      %p87 = scmp.ne.s32.totalorder %s70, %s86
      %p88 = scmp.eq.s32.totalorder %s20, 0
      %p89 = por %p87, %p88
      %s90 = ssub.s32 %s14, %s21
      %p91 = scmp.eq.s32.totalorder %s90, 0
      %s93 = sadd.s32 %s92, 1
      %s94 = scalar_select %p91, %s92, %s93
      %p97 = pneg %p91
      %p98 = scmp.eq.s32.totalorder %s14, 3
      %p99 = por %p97, %p98
      %p100 = scmp.ne.s32.totalorder %s92, %s95
      %p101 = scmp.eq.s32.totalorder %s14, 0
      %p102 = por %p100, %p101
      %p103 = scmp.ne.s32.totalorder %s92, %s95
      %p104 = scmp.eq.s32.totalorder %s19, 3
      %p105 = por %p103, %p104
      %p106 = scmp.ne.s32.totalorder %s95, %s96
      %p107 = scmp.eq.s32.totalorder %s19, 0
      %p108 = por %p106, %p107
      %p109 = scmp.ne.s32.totalorder %s95, %s96
      %p110 = scmp.eq.s32.totalorder %s20, 3
      %p111 = por %p109, %p110
      %p113 = scmp.ne.s32.totalorder %s96, %s112
      %p114 = scmp.eq.s32.totalorder %s20, 0
      %p115 = por %p113, %p114
      %p116 = scmp.le.s32.totalorder 1, %s14
      %p117 = scmp.lt.s32.totalorder %s14, 5
      %p118 = pnand %p116, %p117
      %p119 = pneg %p118
      // Predicated region
      $region9: #{unentangled_forward.1} parent=5 // pred_check
        _
      $region10: #{unentangled_forward.1} parent=5 // pred_check_branch
        %121 = sbr.rel (%p118) target = $region12
      $region11: #{unentangled_forward.1} parent=5 // pred_region
        %s122 = ssub.s32 %s14, 1
        // Predicated region
        $region13: #{unentangled_forward.1} parent=11 // pred_check
          %p123 = pneg %p35
        $region14: #{unentangled_forward.1} parent=11 // pred_check_branch
          %125 = sbr.rel (%p123) target = $region16
        $region15: #{unentangled_forward.1} parent=11 // pred_region
          %s127 = ssub.s32 16, 16
          %128 = vsyncadd [#allocation4], %s127
          %s130 = sshll.u32 %s0, 4
          %s131 = int_to_ptr.vmem [resolvable:$true] %s130
          %133 = dma.vmem_to_smem %s131, 16, [#allocation2], [#allocation4]
        $region16: #{unentangled_forward.1} parent=11 // pred_fallthru
          _
        // Predicated region
        $region17: #{unentangled_forward.1} parent=11 // pred_check
          %p134 = pneg %p56
        $region18: #{unentangled_forward.1} parent=11 // pred_check_branch
          %136 = sbr.rel (%p134) target = $region20
        $region19: #{unentangled_forward.1} parent=11 // pred_region
          %s138 = ssub.s32 16, 16
          %139 = vsyncadd [#allocation6], %s138
          %s141 = sshll.u32 %s1, 4
          %s142 = int_to_ptr.vmem [resolvable:$true] %s141
          %144 = dma.vmem_to_smem %s142, 16, [#allocation5], [#allocation6]
        $region20: #{unentangled_forward.1} parent=11 // pred_fallthru
          _
      $region12: #{unentangled_forward.1} parent=5 // pred_fallthru
        _
      %p145 = scmp.lt.s32.totalorder %s14, 4
      // Predicated region
      $region21: #{unentangled_forward.1} parent=5 // pred_check
        %p146 = pneg %p145
      $region22: #{unentangled_forward.1} parent=5 // pred_check_branch
        %148 = sbr.rel (%p146) target = $region24
      $region23: #{unentangled_forward.1} parent=5 // pred_region
        // Predicated region
        $region25: #{unentangled_forward.1} parent=23 // pred_check
          %p149 = pneg %p76
        $region26: #{unentangled_forward.1} parent=23 // pred_check_branch
          %151 = sbr.rel (%p149) target = $region28
        $region27: #{unentangled_forward.1} parent=23 // pred_region
          %p152 = scmp.lt.s32.totalorder %s14, 3
          %s153 = scalar_select %p152, %s14, 3
          %s154 = smul.addr %s153, 8
          %s155 = scalar_lea.vmem %s2, %s154
        $region28: #{unentangled_forward.1} parent=23 // pred_fallthru
          _
      $region24: #{unentangled_forward.1} parent=5 // pred_fallthru
        _
      %p156 = scmp.le.s32.totalorder 1, %s14
      %p157 = scmp.lt.s32.totalorder %s14, 5
      %p158 = pnand %p156, %p157
      %p159 = pneg %p158
      // Predicated region
      $region29: #{unentangled_forward.1} parent=5 // pred_check
        _
      $region30: #{unentangled_forward.1} parent=5 // pred_check_branch
        %161 = sbr.rel (%p158) target = $region32
      $region31: #{unentangled_forward.1} parent=5 // pred_region
        %s162 = ssub.s32 %s14, 1
        // Predicated region
        $region33: #{unentangled_forward.1} parent=31 // pred_check
          %p163 = pneg %p35
        $region34: #{unentangled_forward.1} parent=31 // pred_check_branch
          %165 = sbr.rel (%p163) target = $region36
        $region35: #{unentangled_forward.1} parent=31 // pred_region
          %166 = dma.done [#allocation4], 16
        $region36: #{unentangled_forward.1} parent=31 // pred_fallthru
          _
        // Predicated region
        $region37: #{unentangled_forward.1} parent=31 // pred_check
          %p167 = pneg %p56
        $region38: #{unentangled_forward.1} parent=31 // pred_check_branch
          %169 = sbr.rel (%p167) target = $region40
        $region39: #{unentangled_forward.1} parent=31 // pred_region
          %170 = dma.done [#allocation6], 16
        $region40: #{unentangled_forward.1} parent=31 // pred_fallthru
          _
        %171 = sfence
        %p172 = pneg %p35
        %p173 = pneg %p32
        %p174 = pneg %p56
        %p175 = pneg %p53
        %p176 = scmp.lt.s32.totalorder %s19, 3
        %s177 = scalar_select %p176, %s19, 3
        %s178 = smul.addr %s177, 8
        %s179 = scalar_lea.vmem %s2, %s178
        %p180 = pneg %p82
        %p181 = pneg %p79
        %p182 = pneg %p108
        %p183 = pneg %p105
        %s184 = sand.u32 %s95, 1
        %s185 = scalar_lea.sflag [#allocation3], %s184
        %s186 = sand.u32 %s95, 1
        %s187 = smul.addr %s186, 8
        %s188 = scalar_lea.vmem [#allocation7], %s187
        %p189 = scmp.lt.s32.totalorder %s19, 3
        %s190 = scalar_select %p189, %s19, 3
        %s191 = smul.addr %s190, 8
        %s192 = scalar_lea.vmem %s2, %s191
        %v193 = vld [vmem:[%s192] sm:$0xff]
        %s194 = sld [smem:[#allocation2]]
        %s195 = sld [smem:[#allocation5]]
        %v196 = vand.u32 %v193, 1
        %vm197 = vcmp.ne.s32.totalorder %v196, 0
        %v198 = vstv %s195
        %v199 = vstv %s194
        %v200 = vsel %vm197, %v198, %v199
        %s201 = sld [smem:[#allocation2 + $0x1]]
        %s202 = sld [smem:[#allocation5 + $0x1]]
        %v203 = vand.u32 %v193, 2
        %vm204 = vcmp.ne.s32.totalorder %v203, 0
        %v205 = vstv %s202
        %v206 = vstv %s201
        %v207 = vsel %vm204, %v205, %v206
        %v208 = vmul.f32 %v200, %v207
        %s209 = sld [smem:[#allocation2 + $0x2]]
        %s210 = sld [smem:[#allocation5 + $0x2]]
        %v211 = vand.u32 %v193, 4
        %vm212 = vcmp.ne.s32.totalorder %v211, 0
        %v213 = vstv %s210
        %v214 = vstv %s209
        %v215 = vsel %vm212, %v213, %v214
        %v216 = vmul.f32 %v208, %v215
        %s217 = sld [smem:[#allocation2 + $0x3]]
        %s218 = sld [smem:[#allocation5 + $0x3]]
        %v219 = vand.u32 %v193, 8
        %vm220 = vcmp.ne.s32.totalorder %v219, 0
        %v221 = vstv %s218
        %v222 = vstv %s217
        %v223 = vsel %vm220, %v221, %v222
        %v224 = vmul.f32 %v216, %v223
        %s225 = sld [smem:[#allocation2 + $0x4]]
        %s226 = sld [smem:[#allocation5 + $0x4]]
        %v227 = vand.u32 %v193, 16
        %vm228 = vcmp.ne.s32.totalorder %v227, 0
        %v229 = vstv %s226
        %v230 = vstv %s225
        %v231 = vsel %vm228, %v229, %v230
        %v232 = vmul.f32 %v224, %v231
        %s233 = sld [smem:[#allocation2 + $0x5]]
        %s234 = sld [smem:[#allocation5 + $0x5]]
        %v235 = vand.u32 %v193, 32
        %vm236 = vcmp.ne.s32.totalorder %v235, 0
        %v237 = vstv %s234
        %v238 = vstv %s233
        %v239 = vsel %vm236, %v237, %v238
        %v240 = vmul.f32 %v232, %v239
        %s241 = sld [smem:[#allocation2 + $0x6]]
        %s242 = sld [smem:[#allocation5 + $0x6]]
        %v243 = vand.u32 %v193, 64
        %vm244 = vcmp.ne.s32.totalorder %v243, 0
        %v245 = vstv %s242
        %v246 = vstv %s241
        %v247 = vsel %vm244, %v245, %v246
        %v248 = vmul.f32 %v240, %v247
        %s249 = sld [smem:[#allocation2 + $0x7]]
        %s250 = sld [smem:[#allocation5 + $0x7]]
        %v251 = vand.u32 %v193, 128
        %vm252 = vcmp.ne.s32.totalorder %v251, 0
        %v253 = vstv %s250
        %v254 = vstv %s249
        %v255 = vsel %vm252, %v253, %v254
        %v256 = vmul.f32 %v248, %v255
        %257 = vst [vmem:[%s188] sm:$0xff] %v256
        %s258 = sand.u32 %s95, 1
        %s259 = scalar_lea.sflag [#allocation3], %s258
        %s260 = sand.u32 %s95, 1
        %s261 = smul.addr %s260, 8
        %s262 = scalar_lea.vmem [#allocation7], %s261
        // Predicated region
        $region41: #{unentangled_forward.1} parent=31 // pred_check
          %p263 = pneg %p105
        $region42: #{unentangled_forward.1} parent=31 // pred_check_branch
          %265 = sbr.rel (%p263) target = $region44
        $region43: #{unentangled_forward.1} parent=31 // pred_region
          %s267 = ssub.s32 128, 128
          %268 = vsyncadd %s259, %s267
          %s269 = smul.addr %s19, 128
          %s270 = scalar_lea.hbm %s3, %s269
          %s272 = sshll.u32 %s262, 4
          %s273 = int_to_ptr.vmem [resolvable:$true] %s272
          %275 = dma.vmem_to_hbm [thread:$0]  %s273, 128, %s270, %s259
        $region44: #{unentangled_forward.1} parent=31 // pred_fallthru
          _
      $region32: #{unentangled_forward.1} parent=5 // pred_fallthru
        _
      %p276 = scmp.le.s32.totalorder 2, %s14
      // Predicated region
      $region45: #{unentangled_forward.1} parent=5 // pred_check
        %p277 = pneg %p276
      $region46: #{unentangled_forward.1} parent=5 // pred_check_branch
        %279 = sbr.rel (%p277) target = $region48
      $region47: #{unentangled_forward.1} parent=5 // pred_region
        %s280 = ssub.s32 %s14, 2
        // Predicated region
        $region49: #{unentangled_forward.1} parent=47 // pred_check
          %p281 = pneg %p111
        $region50: #{unentangled_forward.1} parent=47 // pred_check_branch
          %283 = sbr.rel (%p281) target = $region52
        $region51: #{unentangled_forward.1} parent=47 // pred_region
          %s284 = sand.u32 %s96, 1
          %s285 = scalar_lea.sflag [#allocation3], %s284
          %s286 = sand.u32 %s96, 1
          %s287 = smul.addr %s286, 8
          %s288 = scalar_lea.vmem [#allocation7], %s287
          %289 = dma.done %s285, 128
        $region52: #{unentangled_forward.1} parent=47 // pred_fallthru
          _
      $region48: #{unentangled_forward.1} parent=5 // pred_fallthru
        _
    $region6: #{unentangled_forward.1} parent=1 // loop_footer
      %s18 = sadd.s32 1, %s14
    $region7: #{unentangled_forward.1} parent=1 // loop_footer_branch
      %13 = sbr.rel target = $region3
    $region8: #{unentangled_forward.1} parent=1 // loop_exit
      _
    %290 = vsyncpa [#allocation3], 1
    %s291 = scalar_lea.sflag [#allocation3], 1
    %292 = vsyncpa %s291, 1
    %293 = vsyncpa [#allocation4], 1
    %s294 = scalar_lea.sflag [#allocation4], 1
    %295 = vsyncpa %s294, 1
    %296 = vsyncpa [#allocation6], 1

</llo_original>
